<compile_context>
chip_gen: v5e
topology: v5e:2x2
jax: 0.10.0
libtpu: 0.0.40
codegen_flags: <defaults>
</compile_context>

<pallas_src>
import math
from functools import partial

import jax
import jax.numpy as jnp
from jax.experimental import pallas as pl
from jax.experimental.pallas import tpu as pltpu

LN_EPS = 1e-5                      # torch.nn.LayerNorm default
INV_SQRT2 = 0.7071067811865475


def _round_up(x, m):
    return (x + m - 1) // m * m


# ----------------------------- Pallas kernel -------------------------------
def grounding_mlp_kernel(img_ref, mimg_ref, mpos_ref, pos_ref, nimg_ref,
                         npos_ref, w1a_ref, w1b_ref, b1_ref, w2_ref, b2_ref,
                         o_ref, *, num_token, ln_dim):
    """Fused null-blend + LayerNorm + fc1 + exact GELU + fc2.

    img_ref : (tile_m, D)     raw image embeddings (tile_m = obj_tile * T)
    mimg_ref: (tile_m, 1)     image mask in {0,1}
    mpos_ref: (tile_m, 1)     position mask in {0,1}
    pos_ref : (obj_tile, 1, P) per-object Fourier position features
    nimg_ref: (T, D)          null image feature   (VMEM-resident constant)
    npos_ref: (T, P)          null position feature (VMEM-resident constant)
    Weights have the LayerNorm affine pre-folded; fc1's K dim is split into
    the image / position halves so the concatenated activation never exists.
    """
    tile_m, d_img = img_ref.shape
    obj_tile = tile_m // num_token
    d_pos = pos_ref.shape[-1]

    img = img_ref[...].astype(jnp.float32)               # (tm, D)
    m_img = mimg_ref[...].astype(jnp.float32)            # (tm, 1)
    m_pos = mpos_ref[...].astype(jnp.float32)            # (tm, 1)

    # Replicate per-object position rows across tokens and per-token null
    # features across objects -- vreg broadcasts only, nothing touches HBM.
    pos = jnp.broadcast_to(pos_ref[...].astype(jnp.float32),
                           (obj_tile, num_token, d_pos)).reshape(tile_m, d_pos)
    nimg = jnp.broadcast_to(nimg_ref[...].astype(jnp.float32)[None],
                            (obj_tile, num_token, d_img)).reshape(tile_m, d_img)
    npos = jnp.broadcast_to(npos_ref[...].astype(jnp.float32)[None],
                            (obj_tile, num_token, d_pos)).reshape(tile_m, d_pos)

    # Fused null-feature blend (masks are 0/1 floats).
    x_img = m_img * img + (1.0 - m_img) * nimg
    x_pos = m_pos * pos + (1.0 - m_pos) * npos

    # LayerNorm statistics over the (virtually) concatenated feature dim
    # (biased variance, PyTorch semantics).  Padded rows end up normalizing
    # the null features: finite values, sliced off in the wrapper.
    inv_n = 1.0 / float(ln_dim)
    s1 = (jnp.sum(x_img, axis=-1, keepdims=True)
          + jnp.sum(x_pos, axis=-1, keepdims=True))
    s2 = (jnp.sum(x_img * x_img, axis=-1, keepdims=True)
          + jnp.sum(x_pos * x_pos, axis=-1, keepdims=True))
    mean = s1 * inv_n
    var = jnp.maximum(s2 * inv_n - mean * mean, 0.0)   # clamp f32 cancellation
    rstd = jax.lax.rsqrt(var + LN_EPS)
    xn_img = (x_img - mean) * rstd
    xn_pos = (x_pos - mean) * rstd

    # fc1 (K split across the two feature groups; LN gamma/beta folded in).
    # Matmul operands cast to the weight dtype (f32 or bf16); f32 accumulate.
    cdt = w1a_ref.dtype
    h = (jnp.dot(xn_img.astype(cdt), w1a_ref[...],
                 preferred_element_type=jnp.float32)
         + jnp.dot(xn_pos.astype(cdt), w1b_ref[...],
                   preferred_element_type=jnp.float32)
         + b1_ref[...])

    # Exact (erf-based) GELU, matching nn.GELU() default, in f32.
    h = 0.5 * h * (1.0 + jax.lax.erf(h * INV_SQRT2))

    # fc2 at natural output width (no lane padding -> 4x less output HBM).
    y = jnp.dot(h.astype(w2_ref.dtype), w2_ref[...],
                preferred_element_type=jnp.float32) + b2_ref[...]
    o_ref[...] = y.astype(o_ref.dtype)


def grounding_mlp_pallas(img2d, mask_img, mask_pos, pos3, null_img, null_pos,
                         w1a, w1b, b1, w2, b2, *, num_token,
                         max_tile_rows=4096):
    """img2d: (rows, D) raw embeddings; masks: (rows, 1); pos3: (B*N, 1, P).

    Returns (rows, out_dim) f32.
    """
    rows, d_img = img2d.shape
    n_obj = pos3.shape[0]
    d_pos = pos3.shape[-1]
    hidden = w1a.shape[1]
    out_dim = w2.shape[1]
    ln_dim = d_img + d_pos
    assert rows == n_obj * num_token
    assert null_img.shape == (num_token, d_img)
    assert null_pos.shape == (num_token, d_pos)

    # --- Tile selection ------------------------------------------------------
    # Big row tiles amortize the ~0.35us/step fixed cost (blocks here are only
    # ~a few hundred KiB even at 4096 rows, far under every generation's
    # scoped-VMEM default); >=2 grid steps keep both v7x TensorCores busy;
    # tiles are balanced so padding stays below one obj_tile; obj_tile*T is
    # kept 8-aligned so the (8,128) row-block constraint holds.
    n_tiles = max(pl.cdiv(rows, max_tile_rows), min(2, n_obj))
    align = 8 // math.gcd(num_token, 8)
    obj_tile = _round_up(pl.cdiv(n_obj, n_tiles), align)
    n_tiles = pl.cdiv(n_obj, obj_tile)
    if n_tiles == 1:
        obj_tile = n_obj                    # single full block: no padding
    n_obj_pad = n_tiles * obj_tile
    tile_m = obj_tile * num_token
    rows_pad = n_obj_pad * num_token

    if n_obj_pad != n_obj:
        pr, po = rows_pad - rows, n_obj_pad - n_obj
        img2d = jnp.pad(img2d, ((0, pr), (0, 0)))
        mask_img = jnp.pad(mask_img, ((0, pr), (0, 0)))
        mask_pos = jnp.pad(mask_pos, ((0, pr), (0, 0)))
        pos3 = jnp.pad(pos3, ((0, po), (0, 0), (0, 0)))

    flops = 2 * rows_pad * (ln_dim * hidden + hidden * out_dim)
    bytes_accessed = sum(int(a.size) * a.dtype.itemsize for a in
                         (img2d, mask_img, mask_pos, pos3, null_img, null_pos,
                          w1a, w1b, b1, w2, b2)) + rows_pad * out_dim * 4
    cost = pl.CostEstimate(flops=int(flops),
                           transcendentals=int(rows_pad * hidden),
                           bytes_accessed=int(bytes_accessed))

    out = pl.pallas_call(
        partial(grounding_mlp_kernel, num_token=num_token, ln_dim=ln_dim),
        out_shape=jax.ShapeDtypeStruct((rows_pad, out_dim), jnp.float32),
        grid_spec=pltpu.PrefetchScalarGridSpec(
            num_scalar_prefetch=0,
            grid=(n_tiles,),
            in_specs=[
                pl.BlockSpec((tile_m, d_img), lambda i: (i, 0)),        # raw img
                pl.BlockSpec((tile_m, 1), lambda i: (i, 0)),            # img mask
                pl.BlockSpec((tile_m, 1), lambda i: (i, 0)),            # pos mask
                pl.BlockSpec((obj_tile, 1, d_pos), lambda i: (i, 0, 0)),  # pos/obj
                pl.BlockSpec((num_token, d_img), lambda i: (0, 0)),     # null img
                pl.BlockSpec((num_token, d_pos), lambda i: (0, 0)),     # null pos
                pl.BlockSpec((d_img, hidden), lambda i: (0, 0)),        # w1[:D]
                pl.BlockSpec((d_pos, hidden), lambda i: (0, 0)),        # w1[D:]
                pl.BlockSpec((1, hidden), lambda i: (0, 0)),            # b1
                pl.BlockSpec((hidden, out_dim), lambda i: (0, 0)),      # w2
                pl.BlockSpec((1, out_dim), lambda i: (0, 0)),           # b2
            ],
            out_specs=pl.BlockSpec((tile_m, out_dim), lambda i: (i, 0)),
        ),
        compiler_params=pltpu.CompilerParams(
            dimension_semantics=("parallel",)),
        cost_estimate=cost,
    )(img2d, mask_img, mask_pos, pos3, null_img, null_pos,
      w1a, w1b, b1, w2, b2)
    return out[:rows]


# --------------------------- parameter preparation ---------------------------
def make_kernel_params(params, *, input_dim, matmul_dtype=jnp.float32):
    """One-time (load-time) kernel-operand prep: fold LayerNorm affine into
    fc1, split fc1's K into image/position halves, flatten null features.

    bf16 matmul operands help on every generation (v5e/v6e/v7x MXUs are all
    bf16-native); LayerNorm / GELU math stays in f32 inside the kernel.
    """
    gamma, beta = params["ln_gamma"], params["ln_beta"]        # (in_dim,)
    w1, b1 = params["w1"], params["b1"]                        # (in_dim, H), (H,)
    w2, b2 = params["w2"], params["b2"]                        # (H, O), (O,)
    hidden = w1.shape[1]
    out_dim = w2.shape[1]

    w1f = gamma[:, None] * w1                 # fold LN scale
    b1f = beta @ w1 + b1                      # fold LN shift
    num_token = params["null_image_feature"].shape[2]

    return dict(
        w1a=w1f[:input_dim].astype(matmul_dtype),
        w1b=w1f[input_dim:].astype(matmul_dtype),
        b1=b1f.reshape(1, hidden).astype(jnp.float32),
        w2=w2.astype(matmul_dtype),
        b2=b2.reshape(1, out_dim).astype(jnp.float32),
        null_img=params["null_image_feature"].reshape(num_token, input_dim),
        null_pos=params["null_position_feature"].reshape(num_token, -1),
        freq_bands=params["freq_bands"],
        out_dim=out_dim,
    )


# ------------------------------ JAX glue ------------------------------------
def fourier_embed(x, freq_bands):
    """FourierEmbedder: per-frequency [sin, cos] blocks concatenated on last dim."""
    xf = x[..., None, :] * freq_bands[:, None]                 # (..., F, C)
    emb = jnp.stack([jnp.sin(xf), jnp.cos(xf)], axis=-2)       # (..., F, 2, C)
    return emb.reshape(*x.shape[:-1], -1)                      # (..., F*2*C)


def grounding_net_forward_pallas(kp, image_embeddings, image_token_idx_mask,
                                 bboxes, *, use_bbox=True):
    """image_embeddings: (B, N, T, D) f32 (bf16 also accepted — the kernel
    upcasts); image_token_idx_mask: (B, N, T, 1) bool; bboxes: (B, N, 4) f32.
    Returns (B, N*T, output_dim)."""
    bsz, num_obj, num_token, dim = image_embeddings.shape
    rows = bsz * num_obj * num_token
    n_obj = bsz * num_obj
    d_pos = kp["null_pos"].shape[-1]

    mask_img = image_token_idx_mask.astype(jnp.float32)        # (B,N,T,1)
    if use_bbox:
        mask_pos = mask_img
    else:
        m = jnp.sum(image_token_idx_mask.astype(jnp.int32), axis=1,
                    keepdims=True) > 1                          # (B,1,T,1)
        mask_pos = jnp.broadcast_to(m.astype(jnp.float32), mask_img.shape)

    pos = fourier_embed(bboxes, kp["freq_bands"])               # (B, N, P) tiny

    y2d = grounding_mlp_pallas(
        image_embeddings.reshape(rows, dim),
        mask_img.reshape(rows, 1),
        mask_pos.reshape(rows, 1),
        pos.reshape(n_obj, 1, d_pos),
        kp["null_img"], kp["null_pos"],
        kp["w1a"], kp["w1b"], kp["b1"], kp["w2"], kp["b2"],
        num_token=num_token)
    return y2d.reshape(bsz, num_obj * num_token, kp["out_dim"])


def grounding_net_forward_ref(params, image_embeddings, image_token_idx_mask,
                              bboxes, *, use_bbox=True):
    """Pure-JAX reference with PyTorch semantics."""
    bsz, num_obj, num_token, dim = image_embeddings.shape
    mask = image_token_idx_mask.astype(jnp.float32)
    img = image_embeddings * mask + (1.0 - mask) * params["null_image_feature"]

    xyxy = fourier_embed(bboxes, params["freq_bands"])[:, :, None, :]
    if not use_bbox:
        m = jnp.sum(image_token_idx_mask.astype(jnp.int32), axis=1,
                    keepdims=True) > 1
        mask = m.astype(jnp.float32)
    xyxy = xyxy * mask + (1.0 - mask) * params["null_position_feature"]

    position_dim = params["null_position_feature"].shape[-1]
    rows = bsz * num_obj * num_token
    x2d = jnp.concatenate([img.reshape(rows, dim),
                           xyxy.reshape(rows, position_dim)], axis=-1)
    mean = jnp.mean(x2d, axis=-1, keepdims=True)
    var = jnp.mean((x2d - mean) ** 2, axis=-1, keepdims=True)
    xn = (x2d - mean) / jnp.sqrt(var + LN_EPS)
    xn = xn * params["ln_gamma"] + params["ln_beta"]
    h = xn @ params["w1"] + params["b1"]
    h = 0.5 * h * (1.0 + jax.lax.erf(h * INV_SQRT2))
    y2d = h @ params["w2"] + params["b2"]
    return y2d.reshape(bsz, num_obj * num_token, params["w2"].shape[1])


def init_params(key, input_dim, output_dim, hidden_dim, fourier_freqs, num_token):
    position_dim = fourier_freqs * 2 * 4
    in_dim = input_dim + position_dim
    ks = jax.random.split(key, 8)
    params = dict(
        # Non-trivial LN affine so the weight-folding path is exercised
        # (module init is ones/zeros; semantics are identical).
        ln_gamma=1.0 + 0.1 * jax.random.normal(ks[6], (in_dim,), jnp.float32),
        ln_beta=0.05 * jax.random.normal(ks[7], (in_dim,), jnp.float32),
        w1=jax.random.normal(ks[0], (in_dim, hidden_dim), jnp.float32)
           / math.sqrt(in_dim),
        b1=0.01 * jax.random.normal(ks[1], (hidden_dim,), jnp.float32),
        w2=jax.random.normal(ks[2], (hidden_dim, output_dim), jnp.float32)
           / math.sqrt(hidden_dim),
        b2=0.01 * jax.random.normal(ks[3], (output_dim,), jnp.float32),
        # Module __init__ uses zeros; small random values exercise masking.
        null_image_feature=0.02 * jax.random.normal(
            ks[4], (1, 1, num_token, input_dim), jnp.float32),
        null_position_feature=0.02 * jax.random.normal(
            ks[5], (1, 1, num_token, position_dim), jnp.float32),
        freq_bands=100.0 ** (jnp.arange(fourier_freqs, dtype=jnp.float32)
                             / fourier_freqs),
    )
    return params, position_dim


# --------------------------------- main --------------------------------------
if __name__ == "__main__":
    # Small shapes consistent with the module.
    bsz, num_obj, num_token = 2, 2, 8
    input_dim, output_dim, hidden_dim, fourier_freqs = 32, 32, 64, 8

    key = jax.random.PRNGKey(0)
    k_par, k_img, k_mask, k_box = jax.random.split(key, 4)

    params, position_dim = init_params(
        k_par, input_dim, output_dim, hidden_dim, fourier_freqs, num_token)

    image_embeddings = jax.random.normal(
        k_img, (bsz, num_obj, num_token, input_dim), jnp.float32)
    image_token_idx_mask = jax.random.bernoulli(
        k_mask, 0.7, (bsz, num_obj, num_token, 1))
    bboxes = jax.random.uniform(k_box, (bsz, num_obj, 4), jnp.float32)

    # Kernel parameters are prepared ONCE, outside the forward (load time).
    kp_f32 = make_kernel_params(params, input_dim=input_dim,
                                matmul_dtype=jnp.float32)
    kp_bf16 = make_kernel_params(params, input_dim=input_dim,
                                 matmul_dtype=jnp.bfloat16)

    for use_bbox in (True, False):
        ref = jax.block_until_ready(grounding_net_forward_ref(
            params, image_embeddings, image_token_idx_mask, bboxes,
            use_bbox=use_bbox))

        # f32 matmul path: preserves PyTorch numerics (tight tolerance).
        out = jax.block_until_ready(grounding_net_forward_pallas(
            kp_f32, image_embeddings, image_token_idx_mask, bboxes,
            use_bbox=use_bbox))
        assert out.shape == (bsz, num_obj * num_token, output_dim), out.shape
        assert jnp.allclose(out, ref, atol=1e-4, rtol=1e-4), (
            use_bbox, float(jnp.max(jnp.abs(out - ref))))

        # bf16 matmul-operand path (good on v5e/v6e/v7x): looser tolerance.
        out_bf16 = jax.block_until_ready(grounding_net_forward_pallas(
            kp_bf16, image_embeddings, image_token_idx_mask, bboxes,
            use_bbox=use_bbox))
        assert jnp.allclose(out_bf16, ref, atol=8e-2, rtol=8e-2), (
            use_bbox, float(jnp.max(jnp.abs(out_bf16 - ref))))

    print("KERNEL_OK")
</pallas_src>

<mosaic_0001>
module attributes {stable_mosaic.version = 11 : i64} {
  func.func @grounding_mlp_kernel(%arg0: i32, %arg1: memref<16x32xf32, #tpu.memory_space<vmem>>, %arg2: memref<16x1xf32, #tpu.memory_space<vmem>>, %arg3: memref<16x1xf32, #tpu.memory_space<vmem>>, %arg4: memref<2x1x64xf32, #tpu.memory_space<vmem>>, %arg5: memref<8x32xf32, #tpu.memory_space<vmem>>, %arg6: memref<8x64xf32, #tpu.memory_space<vmem>>, %arg7: memref<32x64xf32, #tpu.memory_space<vmem>>, %arg8: memref<64x64xf32, #tpu.memory_space<vmem>>, %arg9: memref<1x64xf32, #tpu.memory_space<vmem>>, %arg10: memref<64x32xf32, #tpu.memory_space<vmem>>, %arg11: memref<1x32xf32, #tpu.memory_space<vmem>>, %arg12: memref<16x32xf32, #tpu.memory_space<vmem>>) attributes {dimension_semantics = [#tpu.dimension_semantics<parallel>], iteration_bounds = array<i64: 2>, scalar_prefetch = 0 : i64, scratch_operands = 0 : i64, tpu.core_type = #tpu.core_type<tc>, window_params = [{transform_indices = @transform_0, window_bounds = array<i64: 16, 32>}, {transform_indices = @transform_1, window_bounds = array<i64: 16, 1>}, {transform_indices = @transform_2, window_bounds = array<i64: 16, 1>}, {transform_indices = @transform_3, window_bounds = array<i64: 2, 1, 64>}, {pipeline_mode = #tpu.pipeline_mode<synchronous>, transform_indices = @transform_4, window_bounds = array<i64: 8, 32>}, {pipeline_mode = #tpu.pipeline_mode<synchronous>, transform_indices = @transform_5, window_bounds = array<i64: 8, 64>}, {pipeline_mode = #tpu.pipeline_mode<synchronous>, transform_indices = @transform_6, window_bounds = array<i64: 32, 64>}, {pipeline_mode = #tpu.pipeline_mode<synchronous>, transform_indices = @transform_7, window_bounds = array<i64: 64, 64>}, {pipeline_mode = #tpu.pipeline_mode<synchronous>, transform_indices = @transform_8, window_bounds = array<i64: 1, 64>}, {pipeline_mode = #tpu.pipeline_mode<synchronous>, transform_indices = @transform_9, window_bounds = array<i64: 64, 32>}, {pipeline_mode = #tpu.pipeline_mode<synchronous>, transform_indices = @transform_10, window_bounds = array<i64: 1, 32>}, {transform_indices = @transform_11, window_bounds = array<i64: 16, 32>}]} {
    %c0 = arith.constant 0 : index
    %c0_0 = arith.constant 0 : index
    %0 = vector.load %arg1[%c0, %c0_0] : memref<16x32xf32, #tpu.memory_space<vmem>>, vector<16x32xf32>
    %c0_1 = arith.constant 0 : index
    %c0_2 = arith.constant 0 : index
    %1 = vector.load %arg2[%c0_1, %c0_2] : memref<16x1xf32, #tpu.memory_space<vmem>>, vector<16x1xf32>
    %c0_3 = arith.constant 0 : index
    %c0_4 = arith.constant 0 : index
    %2 = vector.load %arg3[%c0_3, %c0_4] : memref<16x1xf32, #tpu.memory_space<vmem>>, vector<16x1xf32>
    %c0_5 = arith.constant 0 : index
    %c0_6 = arith.constant 0 : index
    %c0_7 = arith.constant 0 : index
    %3 = vector.load %arg4[%c0_5, %c0_6, %c0_7] : memref<2x1x64xf32, #tpu.memory_space<vmem>>, vector<2x1x64xf32>
    %4 = vector.shape_cast %3 : vector<2x1x64xf32> to vector<2x1x64xf32>
    %5 = vector.broadcast %4 : vector<2x1x64xf32> to vector<2x8x64xf32>
    %6 = vector.shape_cast %5 : vector<2x8x64xf32> to vector<16x64xf32>
    %c0_8 = arith.constant 0 : index
    %c0_9 = arith.constant 0 : index
    %7 = vector.load %arg5[%c0_8, %c0_9] : memref<8x32xf32, #tpu.memory_space<vmem>>, vector<8x32xf32>
    %8 = vector.shape_cast %7 : vector<8x32xf32> to vector<1x8x32xf32>
    %9 = vector.shape_cast %8 : vector<1x8x32xf32> to vector<1x8x32xf32>
    %10 = vector.broadcast %9 : vector<1x8x32xf32> to vector<2x8x32xf32>
    %11 = vector.shape_cast %10 : vector<2x8x32xf32> to vector<16x32xf32>
    %c0_10 = arith.constant 0 : index
    %c0_11 = arith.constant 0 : index
    %12 = vector.load %arg6[%c0_10, %c0_11] : memref<8x64xf32, #tpu.memory_space<vmem>>, vector<8x64xf32>
    %13 = vector.shape_cast %12 : vector<8x64xf32> to vector<1x8x64xf32>
    %14 = vector.shape_cast %13 : vector<1x8x64xf32> to vector<1x8x64xf32>
    %15 = vector.broadcast %14 : vector<1x8x64xf32> to vector<2x8x64xf32>
    %16 = vector.shape_cast %15 : vector<2x8x64xf32> to vector<16x64xf32>
    %17 = vector.broadcast %1 : vector<16x1xf32> to vector<16x32xf32>
    %18 = arith.mulf %17, %0 : vector<16x32xf32>
    %cst = arith.constant 1.000000e+00 : f32
    %19 = vector.broadcast %cst : f32 to vector<16x1xf32>
    %20 = arith.subf %19, %1 : vector<16x1xf32>
    %21 = vector.broadcast %20 : vector<16x1xf32> to vector<16x32xf32>
    %22 = arith.mulf %21, %11 : vector<16x32xf32>
    %23 = arith.addf %18, %22 : vector<16x32xf32>
    %24 = vector.broadcast %2 : vector<16x1xf32> to vector<16x64xf32>
    %25 = arith.mulf %24, %6 : vector<16x64xf32>
    %cst_12 = arith.constant 1.000000e+00 : f32
    %26 = vector.broadcast %cst_12 : f32 to vector<16x1xf32>
    %27 = arith.subf %26, %2 : vector<16x1xf32>
    %28 = vector.broadcast %27 : vector<16x1xf32> to vector<16x64xf32>
    %29 = arith.mulf %28, %16 : vector<16x64xf32>
    %30 = arith.addf %25, %29 : vector<16x64xf32>
    %cst_13 = arith.constant dense<0.000000e+00> : vector<16xf32>
    %31 = vector.multi_reduction <add>, %23, %cst_13 [1] : vector<16x32xf32> to vector<16xf32>
    %32 = vector.shape_cast %31 : vector<16xf32> to vector<16x1xf32>
    %cst_14 = arith.constant dense<0.000000e+00> : vector<16xf32>
    %33 = vector.multi_reduction <add>, %30, %cst_14 [1] : vector<16x64xf32> to vector<16xf32>
    %34 = vector.shape_cast %33 : vector<16xf32> to vector<16x1xf32>
    %35 = arith.addf %32, %34 : vector<16x1xf32>
    %36 = arith.mulf %23, %23 : vector<16x32xf32>
    %cst_15 = arith.constant dense<0.000000e+00> : vector<16xf32>
    %37 = vector.multi_reduction <add>, %36, %cst_15 [1] : vector<16x32xf32> to vector<16xf32>
    %38 = vector.shape_cast %37 : vector<16xf32> to vector<16x1xf32>
    %39 = arith.mulf %30, %30 : vector<16x64xf32>
    %cst_16 = arith.constant dense<0.000000e+00> : vector<16xf32>
    %40 = vector.multi_reduction <add>, %39, %cst_16 [1] : vector<16x64xf32> to vector<16xf32>
    %41 = vector.shape_cast %40 : vector<16xf32> to vector<16x1xf32>
    %42 = arith.addf %38, %41 : vector<16x1xf32>
    %cst_17 = arith.constant 0.010416667 : f32
    %43 = vector.broadcast %cst_17 : f32 to vector<16x1xf32>
    %44 = arith.mulf %35, %43 : vector<16x1xf32>
    %cst_18 = arith.constant 0.010416667 : f32
    %45 = vector.broadcast %cst_18 : f32 to vector<16x1xf32>
    %46 = arith.mulf %42, %45 : vector<16x1xf32>
    %47 = arith.mulf %44, %44 : vector<16x1xf32>
    %48 = arith.subf %46, %47 : vector<16x1xf32>
    %cst_19 = arith.constant 0.000000e+00 : f32
    %49 = vector.broadcast %cst_19 : f32 to vector<16x1xf32>
    %50 = arith.maximumf %48, %49 : vector<16x1xf32>
    %cst_20 = arith.constant 9.99999974E-6 : f32
    %51 = vector.broadcast %cst_20 : f32 to vector<16x1xf32>
    %52 = arith.addf %50, %51 : vector<16x1xf32>
    %53 = math.rsqrt %52 : vector<16x1xf32>
    %54 = vector.broadcast %44 : vector<16x1xf32> to vector<16x32xf32>
    %55 = arith.subf %23, %54 : vector<16x32xf32>
    %56 = vector.broadcast %53 : vector<16x1xf32> to vector<16x32xf32>
    %57 = arith.mulf %55, %56 : vector<16x32xf32>
    %58 = vector.broadcast %44 : vector<16x1xf32> to vector<16x64xf32>
    %59 = arith.subf %30, %58 : vector<16x64xf32>
    %60 = vector.broadcast %53 : vector<16x1xf32> to vector<16x64xf32>
    %61 = arith.mulf %59, %60 : vector<16x64xf32>
    %c0_21 = arith.constant 0 : index
    %c0_22 = arith.constant 0 : index
    %62 = vector.load %arg7[%c0_21, %c0_22] : memref<32x64xf32, #tpu.memory_space<vmem>>, vector<32x64xf32>
    %cst_23 = arith.constant dense<0.000000e+00> : vector<16x64xf32>
    %63 = tpu.matmul %57, %62, %cst_23 {dimension_numbers = #tpu.dot_dimension_numbers<[1], [0], [0], [1], [0, 0, 1, 1], [], []>} : vector<16x32xf32>, vector<32x64xf32>, vector<16x64xf32> -> vector<16x64xf32>
    %c0_24 = arith.constant 0 : index
    %c0_25 = arith.constant 0 : index
    %64 = vector.load %arg8[%c0_24, %c0_25] : memref<64x64xf32, #tpu.memory_space<vmem>>, vector<64x64xf32>
    %cst_26 = arith.constant dense<0.000000e+00> : vector<16x64xf32>
    %65 = tpu.matmul %61, %64, %cst_26 {dimension_numbers = #tpu.dot_dimension_numbers<[1], [0], [0], [1], [0, 0, 1, 1], [], []>} : vector<16x64xf32>, vector<64x64xf32>, vector<16x64xf32> -> vector<16x64xf32>
    %66 = arith.addf %63, %65 : vector<16x64xf32>
    %c0_27 = arith.constant 0 : index
    %c0_28 = arith.constant 0 : index
    %67 = vector.load %arg9[%c0_27, %c0_28] : memref<1x64xf32, #tpu.memory_space<vmem>>, vector<1x64xf32>
    %68 = vector.broadcast %67 : vector<1x64xf32> to vector<16x64xf32>
    %69 = arith.addf %66, %68 : vector<16x64xf32>
    %cst_29 = arith.constant 5.000000e-01 : f32
    %70 = vector.broadcast %cst_29 : f32 to vector<16x64xf32>
    %71 = arith.mulf %70, %69 : vector<16x64xf32>
    %cst_30 = arith.constant 0.707106769 : f32
    %72 = vector.broadcast %cst_30 : f32 to vector<16x64xf32>
    %73 = arith.mulf %69, %72 : vector<16x64xf32>
    %74 = math.erf %73 : vector<16x64xf32>
    %cst_31 = arith.constant 1.000000e+00 : f32
    %75 = vector.broadcast %cst_31 : f32 to vector<16x64xf32>
    %76 = arith.addf %75, %74 : vector<16x64xf32>
    %77 = arith.mulf %71, %76 : vector<16x64xf32>
    %c0_32 = arith.constant 0 : index
    %c0_33 = arith.constant 0 : index
    %78 = vector.load %arg10[%c0_32, %c0_33] : memref<64x32xf32, #tpu.memory_space<vmem>>, vector<64x32xf32>
    %cst_34 = arith.constant dense<0.000000e+00> : vector<16x32xf32>
    %79 = tpu.matmul %77, %78, %cst_34 {dimension_numbers = #tpu.dot_dimension_numbers<[1], [0], [0], [1], [0, 0, 1, 1], [], []>} : vector<16x64xf32>, vector<64x32xf32>, vector<16x32xf32> -> vector<16x32xf32>
    %c0_35 = arith.constant 0 : index
    %c0_36 = arith.constant 0 : index
    %80 = vector.load %arg11[%c0_35, %c0_36] : memref<1x32xf32, #tpu.memory_space<vmem>>, vector<1x32xf32>
    %81 = vector.broadcast %80 : vector<1x32xf32> to vector<16x32xf32>
    %82 = arith.addf %79, %81 : vector<16x32xf32>
    %c0_37 = arith.constant 0 : index
    %c0_38 = arith.constant 0 : index
    %83 = vector.load %arg12[%c0_37, %c0_38] : memref<16x32xf32, #tpu.memory_space<vmem>>, vector<16x32xf32>
    tpu.vector_store %arg12[%c0_37, %c0_38], %82 {strides = array<i32>} : memref<16x32xf32, #tpu.memory_space<vmem>>, vector<16x32xf32>,
    return
  }
  func.func @transform_0(%arg0: i32) -> (i32, i32) {
    %c0_i32 = arith.constant 0 : i32
    %c0_i32_0 = arith.constant 0 : i32
    return %arg0, %c0_i32 : i32, i32
  }
  func.func @transform_1(%arg0: i32) -> (i32, i32) {
    %c0_i32 = arith.constant 0 : i32
    %c0_i32_0 = arith.constant 0 : i32
    return %arg0, %c0_i32 : i32, i32
  }
  func.func @transform_2(%arg0: i32) -> (i32, i32) {
    %c0_i32 = arith.constant 0 : i32
    %c0_i32_0 = arith.constant 0 : i32
    return %arg0, %c0_i32 : i32, i32
  }
  func.func @transform_3(%arg0: i32) -> (i32, i32, i32) {
    %c0_i32 = arith.constant 0 : i32
    %c0_i32_0 = arith.constant 0 : i32
    %c0_i32_1 = arith.constant 0 : i32
    return %arg0, %c0_i32, %c0_i32_0 : i32, i32, i32
  }
  func.func @transform_4(%arg0: i32) -> (i32, i32) {
    %c0_i32 = arith.constant 0 : i32
    %c0_i32_0 = arith.constant 0 : i32
    %c0_i32_1 = arith.constant 0 : i32
    return %c0_i32, %c0_i32_0 : i32, i32
  }
  func.func @transform_5(%arg0: i32) -> (i32, i32) {
    %c0_i32 = arith.constant 0 : i32
    %c0_i32_0 = arith.constant 0 : i32
    %c0_i32_1 = arith.constant 0 : i32
    return %c0_i32, %c0_i32_0 : i32, i32
  }
  func.func @transform_6(%arg0: i32) -> (i32, i32) {
    %c0_i32 = arith.constant 0 : i32
    %c0_i32_0 = arith.constant 0 : i32
    %c0_i32_1 = arith.constant 0 : i32
    return %c0_i32, %c0_i32_0 : i32, i32
  }
  func.func @transform_7(%arg0: i32) -> (i32, i32) {
    %c0_i32 = arith.constant 0 : i32
    %c0_i32_0 = arith.constant 0 : i32
    %c0_i32_1 = arith.constant 0 : i32
    return %c0_i32, %c0_i32_0 : i32, i32
  }
  func.func @transform_8(%arg0: i32) -> (i32, i32) {
    %c0_i32 = arith.constant 0 : i32
    %c0_i32_0 = arith.constant 0 : i32
    %c0_i32_1 = arith.constant 0 : i32
    return %c0_i32, %c0_i32_0 : i32, i32
  }
  func.func @transform_9(%arg0: i32) -> (i32, i32) {
    %c0_i32 = arith.constant 0 : i32
    %c0_i32_0 = arith.constant 0 : i32
    %c0_i32_1 = arith.constant 0 : i32
    return %c0_i32, %c0_i32_0 : i32, i32
  }
  func.func @transform_10(%arg0: i32) -> (i32, i32) {
    %c0_i32 = arith.constant 0 : i32
    %c0_i32_0 = arith.constant 0 : i32
    %c0_i32_1 = arith.constant 0 : i32
    return %c0_i32, %c0_i32_0 : i32, i32
  }
  func.func @transform_11(%arg0: i32) -> (i32, i32) {
    %c0_i32 = arith.constant 0 : i32
    %c0_i32_0 = arith.constant 0 : i32
    return %arg0, %c0_i32 : i32, i32
  }
}

</mosaic_0001>

<llo_original>
// kernel: tpu_custom_call.1
$region0: #{tpu_custom_call.1}
  #allocation0 [shape = 'u32[]', space=smem, size = 0x4, offset = 0x4, fixed_abs, tag = 'smem constant byte address 0x4 - core index']
  #allocation1 [shape = 'u32[72,128]{1,0:T(1,128)}', space=vmem, size = 0x9000, scoped, tag = 'internal scratch']
  %s0 = inlined_call_operand.vmem [shape: f32[32,32], index: 0, kind: input, shape index: {}]
  %s1 = inlined_call_operand.vmem [shape: f32[32,1], index: 1, kind: input, shape index: {}]
  %s2 = inlined_call_operand.vmem [shape: f32[32,1], index: 2, kind: input, shape index: {}]
  %s3 = inlined_call_operand.hbm [shape: f32[4,1,64], index: 3, kind: input, shape index: {}]
  %s4 = inlined_call_operand.hbm [shape: f32[8,32], index: 4, kind: input, shape index: {}]
  %s5 = inlined_call_operand.hbm [shape: f32[8,64], index: 5, kind: input, shape index: {}]
  %s6 = inlined_call_operand.vmem [shape: f32[32,64], index: 6, kind: input, shape index: {}]
  %s7 = inlined_call_operand.vmem [shape: f32[64,64], index: 7, kind: input, shape index: {}]
  %s8 = inlined_call_operand.vmem [shape: f32[1,64], index: 8, kind: input, shape index: {}]
  %s9 = inlined_call_operand.vmem [shape: f32[64,32], index: 9, kind: input, shape index: {}]
  %s10 = inlined_call_operand.vmem [shape: f32[1,32], index: 10, kind: input, shape index: {}]
  %s11 = inlined_call_operand.hbm [shape: f32[32,32], index: 11, kind: output, shape index: {}]
  %s12 = sld [smem:[#allocation0]]
  $region89: #{tpu_custom_call.1} parent=0
    _
  %s14 = ssub.s32 1, %s12
  %s15 = scalar_select 0, %s14, %s12
  $region1: #{tpu_custom_call.1} parent=0
    #allocation2 [shape = 'u8[2048]{0}', space=vmem, size = 0x800, scoped, tag = 'input window, operand 3']
    #allocation3 [shape = 's32[2]{0}', space=sflag, size = 0x8, scoped, tag = 'scoped memory for tpu_custom_call.1']
    #allocation4 [shape = 's32[2]{0}', space=sflag, size = 0x8, scoped, tag = 'scoped memory for tpu_custom_call.1']
    #allocation5 [shape = 'u8[4096]{0}', space=vmem, size = 0x1000, scoped, tag = 'input window, operand 4, single buffered']
    #allocation6 [shape = 's32[1]{0}', space=sflag, size = 0x4, scoped, tag = 'scoped memory for tpu_custom_call.1']
    #allocation7 [shape = 'u8[4096]{0}', space=vmem, size = 0x1000, scoped, tag = 'input window, operand 5, single buffered']
    #allocation8 [shape = 'u8[16384]{0}', space=vmem, size = 0x4000, scoped, tag = 'output window, operand 0']
    %16 = vsyncpa [#allocation3], 0
    %s17 = scalar_lea.sflag [#allocation3], 1
    %18 = vsyncpa %s17, 0
    %19 = vsyncpa [#allocation6], 0
    %20 = vsyncpa [#allocation4], 0
    %s21 = scalar_lea.sflag [#allocation4], 1
    %22 = vsyncpa %s21, 0
    loop: start=0, step=1, limit=4
    $region2: #{tpu_custom_call.1} parent=1 // loop_pre_header
      _
    $region3: #{tpu_custom_call.1} parent=1 // loop_header
      %s24 = sphi 0, %s28
      %p25 = scmp.ge.s32.totalorder %s24, 4
      %s34 = sphi 0, %s36
      %s37 = sphi 0, %s34
      %s38 = sphi 0, %s37
      %s54 = sphi 0, %s38
      %s60 = sphi 0, %s62
      %s63 = sphi 0, %s60
      %s64 = sphi 0, %s63
      %s80 = sphi 0, %s64
      %s86 = sphi 0, %s88
      %s89 = sphi 0, %s86
      %s90 = sphi 0, %s89
      %s106 = sphi 0, %s90
      %s112 = sphi 0, %s114
      %s115 = sphi 0, %s112
      %s116 = sphi 0, %s115
      %s132 = sphi 0, %s116
      %s136 = sphi 0, %s136
      %s138 = sphi 0, %s136
      %s139 = sphi 0, %s138
      %s153 = sphi 0, %s139
      %s157 = sphi 0, %s157
      %s159 = sphi 0, %s157
      %s160 = sphi 0, %s159
      %s174 = sphi 0, %s160
      %s178 = sphi 0, %s178
      %s180 = sphi 0, %s178
      %s181 = sphi 0, %s180
      %s195 = sphi 0, %s181
      %s199 = sphi 0, %s199
      %s201 = sphi 0, %s199
      %s202 = sphi 0, %s201
      %s216 = sphi 0, %s202
      %s220 = sphi 0, %s220
      %s222 = sphi 0, %s220
      %s223 = sphi 0, %s222
      %s237 = sphi 0, %s223
      %s241 = sphi 0, %s241
      %s243 = sphi 0, %s241
      %s244 = sphi 0, %s243
      %s258 = sphi 0, %s244
      %s262 = sphi 0, %s262
      %s264 = sphi 0, %s262
      %s265 = sphi 0, %s264
      %s279 = sphi 0, %s265
      %s285 = sphi 0, %s287
      %s288 = sphi 0, %s285
      %s289 = sphi 0, %s288
      %s305 = sphi 0, %s289
    $region4: #{tpu_custom_call.1} parent=1 // loop_header_branch
      %27 = sbr.rel (%p25) target = $region8
    $region5: #{tpu_custom_call.1} parent=1 // loop_body
      %s29 = ssub.s32 %s24, 1
      %s30 = ssub.s32 %s24, 2
      %s31 = sadd.s32 %s24, 1
      %s32 = ssub.s32 %s24, %s31
      %p33 = scmp.eq.s32.totalorder %s32, 0
      %s35 = sadd.s32 %s34, 1
      %s36 = scalar_select %p33, %s34, %s35
      %p39 = pneg %p33
      %p40 = scmp.eq.s32.totalorder %s24, 1
      %p41 = por %p39, %p40
      %p42 = scmp.ne.s32.totalorder %s34, %s37
      %p43 = scmp.eq.s32.totalorder %s24, 0
      %p44 = por %p42, %p43
      %p45 = scmp.ne.s32.totalorder %s34, %s37
      %p46 = scmp.eq.s32.totalorder %s29, 1
      %p47 = por %p45, %p46
      %p48 = scmp.ne.s32.totalorder %s37, %s38
      %p49 = scmp.eq.s32.totalorder %s29, 0
      %p50 = por %p48, %p49
      %p51 = scmp.ne.s32.totalorder %s37, %s38
      %p52 = scmp.eq.s32.totalorder %s30, 1
      %p53 = por %p51, %p52
      %p55 = scmp.ne.s32.totalorder %s38, %s54
      %p56 = scmp.eq.s32.totalorder %s30, 0
      %p57 = por %p55, %p56
      %s58 = ssub.s32 %s24, %s31
      %p59 = scmp.eq.s32.totalorder %s58, 0
      %s61 = sadd.s32 %s60, 1
      %s62 = scalar_select %p59, %s60, %s61
      %p65 = pneg %p59
      %p66 = scmp.eq.s32.totalorder %s24, 1
      %p67 = por %p65, %p66
      %p68 = scmp.ne.s32.totalorder %s60, %s63
      %p69 = scmp.eq.s32.totalorder %s24, 0
      %p70 = por %p68, %p69
      %p71 = scmp.ne.s32.totalorder %s60, %s63
      %p72 = scmp.eq.s32.totalorder %s29, 1
      %p73 = por %p71, %p72
      %p74 = scmp.ne.s32.totalorder %s63, %s64
      %p75 = scmp.eq.s32.totalorder %s29, 0
      %p76 = por %p74, %p75
      %p77 = scmp.ne.s32.totalorder %s63, %s64
      %p78 = scmp.eq.s32.totalorder %s30, 1
      %p79 = por %p77, %p78
      %p81 = scmp.ne.s32.totalorder %s64, %s80
      %p82 = scmp.eq.s32.totalorder %s30, 0
      %p83 = por %p81, %p82
      %s84 = ssub.s32 %s24, %s31
      %p85 = scmp.eq.s32.totalorder %s84, 0
      %s87 = sadd.s32 %s86, 1
      %s88 = scalar_select %p85, %s86, %s87
      %p91 = pneg %p85
      %p92 = scmp.eq.s32.totalorder %s24, 1
      %p93 = por %p91, %p92
      %p94 = scmp.ne.s32.totalorder %s86, %s89
      %p95 = scmp.eq.s32.totalorder %s24, 0
      %p96 = por %p94, %p95
      %p97 = scmp.ne.s32.totalorder %s86, %s89
      %p98 = scmp.eq.s32.totalorder %s29, 1
      %p99 = por %p97, %p98
      %p100 = scmp.ne.s32.totalorder %s89, %s90
      %p101 = scmp.eq.s32.totalorder %s29, 0
      %p102 = por %p100, %p101
      %p103 = scmp.ne.s32.totalorder %s89, %s90
      %p104 = scmp.eq.s32.totalorder %s30, 1
      %p105 = por %p103, %p104
      %p107 = scmp.ne.s32.totalorder %s90, %s106
      %p108 = scmp.eq.s32.totalorder %s30, 0
      %p109 = por %p107, %p108
      %s110 = ssub.s32 %s24, %s31
      %p111 = scmp.eq.s32.totalorder %s110, 0
      %s113 = sadd.s32 %s112, 1
      %s114 = scalar_select %p111, %s112, %s113
      %p117 = pneg %p111
      %p118 = scmp.eq.s32.totalorder %s24, 1
      %p119 = por %p117, %p118
      %p120 = scmp.ne.s32.totalorder %s112, %s115
      %p121 = scmp.eq.s32.totalorder %s24, 0
      %p122 = por %p120, %p121
      %p123 = scmp.ne.s32.totalorder %s112, %s115
      %p124 = scmp.eq.s32.totalorder %s29, 1
      %p125 = por %p123, %p124
      %p126 = scmp.ne.s32.totalorder %s115, %s116
      %p127 = scmp.eq.s32.totalorder %s29, 0
      %p128 = por %p126, %p127
      %p129 = scmp.ne.s32.totalorder %s115, %s116
      %p130 = scmp.eq.s32.totalorder %s30, 1
      %p131 = por %p129, %p130
      %p133 = scmp.ne.s32.totalorder %s116, %s132
      %p134 = scmp.eq.s32.totalorder %s30, 0
      %p135 = por %p133, %p134
      %s137 = sadd.s32 %s136, 1
      %p140 = scmp.eq.s32.totalorder %s24, 1
      %p141 = scmp.ne.s32.totalorder %s136, %s138
      %p142 = scmp.eq.s32.totalorder %s24, 0
      %p143 = por %p141, %p142
      %p144 = scmp.ne.s32.totalorder %s136, %s138
      %p145 = scmp.eq.s32.totalorder %s29, 1
      %p146 = por %p144, %p145
      %p147 = scmp.ne.s32.totalorder %s138, %s139
      %p148 = scmp.eq.s32.totalorder %s29, 0
      %p149 = por %p147, %p148
      %p150 = scmp.ne.s32.totalorder %s138, %s139
      %p151 = scmp.eq.s32.totalorder %s30, 1
      %p152 = por %p150, %p151
      %p154 = scmp.ne.s32.totalorder %s139, %s153
      %p155 = scmp.eq.s32.totalorder %s30, 0
      %p156 = por %p154, %p155
      %s158 = sadd.s32 %s157, 1
      %p161 = scmp.eq.s32.totalorder %s24, 1
      %p162 = scmp.ne.s32.totalorder %s157, %s159
      %p163 = scmp.eq.s32.totalorder %s24, 0
      %p164 = por %p162, %p163
      %p165 = scmp.ne.s32.totalorder %s157, %s159
      %p166 = scmp.eq.s32.totalorder %s29, 1
      %p167 = por %p165, %p166
      %p168 = scmp.ne.s32.totalorder %s159, %s160
      %p169 = scmp.eq.s32.totalorder %s29, 0
      %p170 = por %p168, %p169
      %p171 = scmp.ne.s32.totalorder %s159, %s160
      %p172 = scmp.eq.s32.totalorder %s30, 1
      %p173 = por %p171, %p172
      %p175 = scmp.ne.s32.totalorder %s160, %s174
      %p176 = scmp.eq.s32.totalorder %s30, 0
      %p177 = por %p175, %p176
      %s179 = sadd.s32 %s178, 1
      %p182 = scmp.eq.s32.totalorder %s24, 1
      %p183 = scmp.ne.s32.totalorder %s178, %s180
      %p184 = scmp.eq.s32.totalorder %s24, 0
      %p185 = por %p183, %p184
      %p186 = scmp.ne.s32.totalorder %s178, %s180
      %p187 = scmp.eq.s32.totalorder %s29, 1
      %p188 = por %p186, %p187
      %p189 = scmp.ne.s32.totalorder %s180, %s181
      %p190 = scmp.eq.s32.totalorder %s29, 0
      %p191 = por %p189, %p190
      %p192 = scmp.ne.s32.totalorder %s180, %s181
      %p193 = scmp.eq.s32.totalorder %s30, 1
      %p194 = por %p192, %p193
      %p196 = scmp.ne.s32.totalorder %s181, %s195
      %p197 = scmp.eq.s32.totalorder %s30, 0
      %p198 = por %p196, %p197
      %s200 = sadd.s32 %s199, 1
      %p203 = scmp.eq.s32.totalorder %s24, 1
      %p204 = scmp.ne.s32.totalorder %s199, %s201
      %p205 = scmp.eq.s32.totalorder %s24, 0
      %p206 = por %p204, %p205
      %p207 = scmp.ne.s32.totalorder %s199, %s201
      %p208 = scmp.eq.s32.totalorder %s29, 1
      %p209 = por %p207, %p208
      %p210 = scmp.ne.s32.totalorder %s201, %s202
      %p211 = scmp.eq.s32.totalorder %s29, 0
      %p212 = por %p210, %p211
      %p213 = scmp.ne.s32.totalorder %s201, %s202
      %p214 = scmp.eq.s32.totalorder %s30, 1
      %p215 = por %p213, %p214
      %p217 = scmp.ne.s32.totalorder %s202, %s216
      %p218 = scmp.eq.s32.totalorder %s30, 0
      %p219 = por %p217, %p218
      %s221 = sadd.s32 %s220, 1
      %p224 = scmp.eq.s32.totalorder %s24, 1
      %p225 = scmp.ne.s32.totalorder %s220, %s222
      %p226 = scmp.eq.s32.totalorder %s24, 0
      %p227 = por %p225, %p226
      %p228 = scmp.ne.s32.totalorder %s220, %s222
      %p229 = scmp.eq.s32.totalorder %s29, 1
      %p230 = por %p228, %p229
      %p231 = scmp.ne.s32.totalorder %s222, %s223
      %p232 = scmp.eq.s32.totalorder %s29, 0
      %p233 = por %p231, %p232
      %p234 = scmp.ne.s32.totalorder %s222, %s223
      %p235 = scmp.eq.s32.totalorder %s30, 1
      %p236 = por %p234, %p235
      %p238 = scmp.ne.s32.totalorder %s223, %s237
      %p239 = scmp.eq.s32.totalorder %s30, 0
      %p240 = por %p238, %p239
      %s242 = sadd.s32 %s241, 1
      %p245 = scmp.eq.s32.totalorder %s24, 1
      %p246 = scmp.ne.s32.totalorder %s241, %s243
      %p247 = scmp.eq.s32.totalorder %s24, 0
      %p248 = por %p246, %p247
      %p249 = scmp.ne.s32.totalorder %s241, %s243
      %p250 = scmp.eq.s32.totalorder %s29, 1
      %p251 = por %p249, %p250
      %p252 = scmp.ne.s32.totalorder %s243, %s244
      %p253 = scmp.eq.s32.totalorder %s29, 0
      %p254 = por %p252, %p253
      %p255 = scmp.ne.s32.totalorder %s243, %s244
      %p256 = scmp.eq.s32.totalorder %s30, 1
      %p257 = por %p255, %p256
      %p259 = scmp.ne.s32.totalorder %s244, %s258
      %p260 = scmp.eq.s32.totalorder %s30, 0
      %p261 = por %p259, %p260
      %s263 = sadd.s32 %s262, 1
      %p266 = scmp.eq.s32.totalorder %s24, 1
      %p267 = scmp.ne.s32.totalorder %s262, %s264
      %p268 = scmp.eq.s32.totalorder %s24, 0
      %p269 = por %p267, %p268
      %p270 = scmp.ne.s32.totalorder %s262, %s264
      %p271 = scmp.eq.s32.totalorder %s29, 1
      %p272 = por %p270, %p271
      %p273 = scmp.ne.s32.totalorder %s264, %s265
      %p274 = scmp.eq.s32.totalorder %s29, 0
      %p275 = por %p273, %p274
      %p276 = scmp.ne.s32.totalorder %s264, %s265
      %p277 = scmp.eq.s32.totalorder %s30, 1
      %p278 = por %p276, %p277
      %p280 = scmp.ne.s32.totalorder %s265, %s279
      %p281 = scmp.eq.s32.totalorder %s30, 0
      %p282 = por %p280, %p281
      %s283 = ssub.s32 %s24, %s31
      %p284 = scmp.eq.s32.totalorder %s283, 0
      %s286 = sadd.s32 %s285, 1
      %s287 = scalar_select %p284, %s285, %s286
      %p290 = pneg %p284
      %p291 = scmp.eq.s32.totalorder %s24, 1
      %p292 = por %p290, %p291
      %p293 = scmp.ne.s32.totalorder %s285, %s288
      %p294 = scmp.eq.s32.totalorder %s24, 0
      %p295 = por %p293, %p294
      %p296 = scmp.ne.s32.totalorder %s285, %s288
      %p297 = scmp.eq.s32.totalorder %s29, 1
      %p298 = por %p296, %p297
      %p299 = scmp.ne.s32.totalorder %s288, %s289
      %p300 = scmp.eq.s32.totalorder %s29, 0
      %p301 = por %p299, %p300
      %p302 = scmp.ne.s32.totalorder %s288, %s289
      %p303 = scmp.eq.s32.totalorder %s30, 1
      %p304 = por %p302, %p303
      %p306 = scmp.ne.s32.totalorder %s289, %s305
      %p307 = scmp.eq.s32.totalorder %s30, 0
      %p308 = por %p306, %p307
      %p309 = scmp.le.s32.totalorder 1, %s24
      %p310 = scmp.lt.s32.totalorder %s24, 3
      %p311 = pnand %p309, %p310
      %p312 = pneg %p311
      // Predicated region
      $region9: #{tpu_custom_call.1} parent=5 // pred_check
        _
      $region10: #{tpu_custom_call.1} parent=5 // pred_check_branch
        %314 = sbr.rel (%p311) target = $region12
      $region11: #{tpu_custom_call.1} parent=5 // pred_region
        %s315 = ssub.s32 %s24, 1
        // Predicated region
        $region13: #{tpu_custom_call.1} parent=11 // pred_check
          %p316 = pneg %p149
        $region14: #{tpu_custom_call.1} parent=11 // pred_check_branch
          %318 = sbr.rel (%p316) target = $region16
        $region15: #{tpu_custom_call.1} parent=11 // pred_region
          %320 = vsyncadd [#allocation6], 0
          %s322 = sshll.u32 %s4, 4
          %s323 = int_to_ptr.hbm [resolvable:$true] %s322
          %s324 = sshll.u32 [#allocation5], 4
          %s325 = int_to_ptr.vmem [resolvable:$true] %s324
          %327 = dma.hbm_to_vmem [thread:$0]  %s323, 128, %s325, [#allocation6]
        $region16: #{tpu_custom_call.1} parent=11 // pred_fallthru
          _
        // Predicated region
        $region17: #{tpu_custom_call.1} parent=11 // pred_check
          %p328 = pneg %p170
        $region18: #{tpu_custom_call.1} parent=11 // pred_check_branch
          %330 = sbr.rel (%p328) target = $region20
        $region19: #{tpu_custom_call.1} parent=11 // pred_region
          %332 = vsyncadd [#allocation6], 0
          %s334 = sshll.u32 %s5, 4
          %s335 = int_to_ptr.hbm [resolvable:$true] %s334
          %s336 = sshll.u32 [#allocation7], 4
          %s337 = int_to_ptr.vmem [resolvable:$true] %s336
          %339 = dma.hbm_to_vmem [thread:$0]  %s335, 128, %s337, [#allocation6]
        $region20: #{tpu_custom_call.1} parent=11 // pred_fallthru
          _
        // Predicated region
        $region21: #{tpu_custom_call.1} parent=11 // pred_check
          %p340 = pneg %p191
        $region22: #{tpu_custom_call.1} parent=11 // pred_check_branch
          %342 = sbr.rel (%p340) target = $region24
        $region23: #{tpu_custom_call.1} parent=11 // pred_region
          _
        $region24: #{tpu_custom_call.1} parent=11 // pred_fallthru
          _
        // Predicated region
        $region25: #{tpu_custom_call.1} parent=11 // pred_check
          %p343 = pneg %p212
        $region26: #{tpu_custom_call.1} parent=11 // pred_check_branch
          %345 = sbr.rel (%p343) target = $region28
        $region27: #{tpu_custom_call.1} parent=11 // pred_region
          _
        $region28: #{tpu_custom_call.1} parent=11 // pred_fallthru
          _
        // Predicated region
        $region29: #{tpu_custom_call.1} parent=11 // pred_check
          %p346 = pneg %p233
        $region30: #{tpu_custom_call.1} parent=11 // pred_check_branch
          %348 = sbr.rel (%p346) target = $region32
        $region31: #{tpu_custom_call.1} parent=11 // pred_region
          _
        $region32: #{tpu_custom_call.1} parent=11 // pred_fallthru
          _
        // Predicated region
        $region33: #{tpu_custom_call.1} parent=11 // pred_check
          %p349 = pneg %p254
        $region34: #{tpu_custom_call.1} parent=11 // pred_check_branch
          %351 = sbr.rel (%p349) target = $region36
        $region35: #{tpu_custom_call.1} parent=11 // pred_region
          _
        $region36: #{tpu_custom_call.1} parent=11 // pred_fallthru
          _
        // Predicated region
        $region37: #{tpu_custom_call.1} parent=11 // pred_check
          %p352 = pneg %p275
        $region38: #{tpu_custom_call.1} parent=11 // pred_check_branch
          %354 = sbr.rel (%p352) target = $region40
        $region39: #{tpu_custom_call.1} parent=11 // pred_region
          _
        $region40: #{tpu_custom_call.1} parent=11 // pred_fallthru
          _
      $region12: #{tpu_custom_call.1} parent=5 // pred_fallthru
        _
      %p355 = scmp.lt.s32.totalorder %s24, 2
      // Predicated region
      $region41: #{tpu_custom_call.1} parent=5 // pred_check
        %p356 = pneg %p355
      $region42: #{tpu_custom_call.1} parent=5 // pred_check_branch
        %358 = sbr.rel (%p356) target = $region44
      $region43: #{tpu_custom_call.1} parent=5 // pred_region
        // Predicated region
        $region45: #{tpu_custom_call.1} parent=43 // pred_check
          %p359 = pneg %p44
        $region46: #{tpu_custom_call.1} parent=43 // pred_check_branch
          %361 = sbr.rel (%p359) target = $region48
        $region47: #{tpu_custom_call.1} parent=43 // pred_region
          %s362 = smul.u32 2, %s24
          %p363 = scmp.lt.s32.totalorder %s362, 3
          %s364 = scalar_select %p363, %s362, 3
          %s365 = smul.addr %s364, 8
          %s366 = scalar_lea.vmem %s0, %s365
          %s367 = smul.u32 2, %s24
        $region48: #{tpu_custom_call.1} parent=43 // pred_fallthru
          _
        // Predicated region
        $region49: #{tpu_custom_call.1} parent=43 // pred_check
          %p368 = pneg %p70
        $region50: #{tpu_custom_call.1} parent=43 // pred_check_branch
          %370 = sbr.rel (%p368) target = $region52
        $region51: #{tpu_custom_call.1} parent=43 // pred_region
          %s371 = smul.u32 2, %s24
          %p372 = scmp.lt.s32.totalorder %s371, 3
          %s373 = scalar_select %p372, %s371, 3
          %s374 = smul.addr %s373, 8
          %s375 = scalar_lea.vmem %s1, %s374
          %s376 = smul.u32 2, %s24
        $region52: #{tpu_custom_call.1} parent=43 // pred_fallthru
          _
        // Predicated region
        $region53: #{tpu_custom_call.1} parent=43 // pred_check
          %p377 = pneg %p96
        $region54: #{tpu_custom_call.1} parent=43 // pred_check_branch
          %379 = sbr.rel (%p377) target = $region56
        $region55: #{tpu_custom_call.1} parent=43 // pred_region
          %s380 = smul.u32 2, %s24
          %p381 = scmp.lt.s32.totalorder %s380, 3
          %s382 = scalar_select %p381, %s380, 3
          %s383 = smul.addr %s382, 8
          %s384 = scalar_lea.vmem %s2, %s383
          %s385 = smul.u32 2, %s24
        $region56: #{tpu_custom_call.1} parent=43 // pred_fallthru
          _
        // Predicated region
        $region57: #{tpu_custom_call.1} parent=43 // pred_check
          %p386 = pneg %p122
        $region58: #{tpu_custom_call.1} parent=43 // pred_check_branch
          %388 = sbr.rel (%p386) target = $region60
        $region59: #{tpu_custom_call.1} parent=43 // pred_region
          %s389 = sand.u32 %s112, 1
          %s390 = scalar_lea.sflag [#allocation3], %s389
          %s391 = sand.u32 %s112, 1
          %s392 = smul.addr %s391, 2
          %s393 = scalar_lea.vmem [#allocation2], %s392
          %s394 = smul.u32 2, %s24
          %396 = vsyncadd %s390, 0
          %s397 = scalar_lea.hbm %s3, %s394
          %s398 = sshll.u32 %s397, 4
          %s399 = int_to_ptr.hbm [resolvable:$true] %s398
          %s400 = sshll.u32 %s393, 4
          %s401 = int_to_ptr.vmem [resolvable:$true] %s400
          %406 = dma.hbm_to_vmem [thread:$0]  %s399, 32, %s401, %s390, 16, 16, 1
        $region60: #{tpu_custom_call.1} parent=43 // pred_fallthru
          _
      $region44: #{tpu_custom_call.1} parent=5 // pred_fallthru
        _
      %p407 = scmp.le.s32.totalorder 1, %s24
      %p408 = scmp.lt.s32.totalorder %s24, 3
      %p409 = pnand %p407, %p408
      %p410 = pneg %p409
      // Predicated region
      $region61: #{tpu_custom_call.1} parent=5 // pred_check
        _
      $region62: #{tpu_custom_call.1} parent=5 // pred_check_branch
        %412 = sbr.rel (%p409) target = $region64
      $region63: #{tpu_custom_call.1} parent=5 // pred_region
        %s413 = ssub.s32 %s24, 1
        %s414 = sand.u32 %s115, 1
        %s415 = scalar_lea.sflag [#allocation3], %s414
        %s416 = sand.u32 %s115, 1
        %s417 = smul.addr %s416, 2
        %s418 = scalar_lea.vmem [#allocation2], %s417
        // Predicated region
        $region65: #{tpu_custom_call.1} parent=63 // pred_check
          %p419 = pneg %p128
        $region66: #{tpu_custom_call.1} parent=63 // pred_check_branch
          %421 = sbr.rel (%p419) target = $region68
        $region67: #{tpu_custom_call.1} parent=63 // pred_region
          %423 = dma.done %s415, 32
        $region68: #{tpu_custom_call.1} parent=63 // pred_fallthru
          _
        // Predicated region
        $region69: #{tpu_custom_call.1} parent=63 // pred_check
          %p424 = pneg %p149
        $region70: #{tpu_custom_call.1} parent=63 // pred_check_branch
          %426 = sbr.rel (%p424) target = $region72
        $region71: #{tpu_custom_call.1} parent=63 // pred_region
          %428 = dma.done [#allocation6], 128
        $region72: #{tpu_custom_call.1} parent=63 // pred_fallthru
          _
        // Predicated region
        $region73: #{tpu_custom_call.1} parent=63 // pred_check
          %p429 = pneg %p170
        $region74: #{tpu_custom_call.1} parent=63 // pred_check_branch
          %431 = sbr.rel (%p429) target = $region76
        $region75: #{tpu_custom_call.1} parent=63 // pred_region
          %433 = dma.done [#allocation6], 128
        $region76: #{tpu_custom_call.1} parent=63 // pred_fallthru
          _
        %s434 = smul.u32 2, %s29
        %p435 = scmp.lt.s32.totalorder %s434, 3
        %s436 = scalar_select %p435, %s434, 3
        %s437 = smul.addr %s436, 8
        %s438 = scalar_lea.vmem %s0, %s437
        %p439 = pneg %p50
        %p440 = pneg %p47
        %s441 = smul.u32 2, %s29
        %p442 = scmp.lt.s32.totalorder %s441, 3
        %s443 = scalar_select %p442, %s441, 3
        %s444 = smul.addr %s443, 8
        %s445 = scalar_lea.vmem %s1, %s444
        %p446 = pneg %p76
        %p447 = pneg %p73
        %s448 = smul.u32 2, %s29
        %p449 = scmp.lt.s32.totalorder %s448, 3
        %s450 = scalar_select %p449, %s448, 3
        %s451 = smul.addr %s450, 8
        %s452 = scalar_lea.vmem %s2, %s451
        %p453 = pneg %p102
        %p454 = pneg %p99
        %s455 = sand.u32 %s115, 1
        %s456 = scalar_lea.sflag [#allocation3], %s455
        %s457 = sand.u32 %s115, 1
        %s458 = smul.addr %s457, 2
        %s459 = scalar_lea.vmem [#allocation2], %s458
        %p460 = pneg %p128
        %p461 = pneg %p125
        %p462 = pneg %p149
        %p463 = pneg %p146
        %p464 = pneg %p170
        %p465 = pneg %p167
        %p466 = pneg %p191
        %p467 = pneg %p188
        %p468 = pneg %p212
        %p469 = pneg %p209
        %p470 = pneg %p233
        %p471 = pneg %p230
        %p472 = pneg %p254
        %p473 = pneg %p251
        %p474 = pneg %p275
        %p475 = pneg %p272
        %p476 = pneg %p301
        %p477 = pneg %p298
        %s478 = sand.u32 %s288, 1
        %s479 = scalar_lea.sflag [#allocation4], %s478
        %s480 = sand.u32 %s288, 1
        %s481 = smul.addr %s480, 16
        %s482 = scalar_lea.vmem [#allocation8], %s481
        %s483 = smul.u32 2, %s29
        %p484 = scmp.lt.s32.totalorder %s483, 3
        %s485 = scalar_select %p484, %s483, 3
        %s486 = smul.addr %s485, 8
        %s487 = scalar_lea.vmem %s0, %s486
        %s488 = smul.u32 2, %s29
        %s489 = smul.u32 2, %s29
        %p490 = scmp.lt.s32.totalorder %s489, 3
        %s491 = scalar_select %p490, %s489, 3
        %s492 = smul.addr %s491, 8
        %s493 = scalar_lea.vmem %s1, %s492
        %s494 = smul.u32 2, %s29
        %s495 = smul.u32 2, %s29
        %p496 = scmp.lt.s32.totalorder %s495, 3
        %s497 = scalar_select %p496, %s495, 3
        %s498 = smul.addr %s497, 8
        %s499 = scalar_lea.vmem %s2, %s498
        %s500 = smul.u32 2, %s29
        %s501 = smul.u32 2, %s29
        %s502 = smul.u32 2, %s29
        %v503 = vld [vmem:[%s487] sm:$0xff]
        %v504 = vld [vmem:[%s487 + $0x8] sm:$0xff]
        %v505 = vld [vmem:[%s493] sm:$0xff]
        %v506 = vld [vmem:[%s493 + $0x8] sm:$0xff]
        %v507 = vld [vmem:[%s499] sm:$0xff]
        %v508 = vld [vmem:[%s499 + $0x8] sm:$0xff]
        %v509 = vld [vmem:[%s418] sm:$0x1]
        %v510 = vld [vmem:[%s418 + $0x1] sm:$0x1]
        %v513 = vperm.slane %v509, 0
        %v514 = vperm.slane %v510, 0
        %v517 = vld [vmem:[#allocation5] sm:$0xff]
        %v518 = vld [vmem:[#allocation7] sm:$0xff]
        %520 = vset.pattern.permute.xlu0 0
        %521 = vperm.xlu0 %520, %v505
        %v522 = vpop.permute.xlu0 %521
        %525 = vset.pattern.permute.xlu0 0
        %526 = vperm.xlu0 %525, %v506
        %v527 = vpop.permute.xlu0 %526
        %v529 = vmul.f32 %v522, %v503
        %v530 = vmul.f32 %v527, %v504
        %v531 = vsub.f32 1.0, %v505
        %v532 = vsub.f32 1.0, %v506
        %534 = vset.pattern.permute.xlu0 0
        %535 = vperm.xlu0 %534, %v531
        %v536 = vpop.permute.xlu0 %535
        %539 = vset.pattern.permute.xlu0 0
        %540 = vperm.xlu0 %539, %v532
        %v541 = vpop.permute.xlu0 %540
        %v543 = vmul.f32 %v536, %v517
        %v544 = vmul.f32 %v541, %v517
        %v545 = vadd.f32 %v529, %v543
        %v546 = vadd.f32 %v530, %v544
        %548 = vset.pattern.permute.xlu0 0
        %549 = vperm.xlu0 %548, %v507
        %v550 = vpop.permute.xlu0 %549
        %553 = vset.pattern.permute.xlu0 0
        %554 = vperm.xlu0 %553, %v508
        %v555 = vpop.permute.xlu0 %554
        %v557 = vmul.f32 %v550, %v513
        %v558 = vmul.f32 %v555, %v514
        %v559 = vsub.f32 1.0, %v507
        %v560 = vsub.f32 1.0, %v508
        %562 = vset.pattern.permute.xlu0 0
        %563 = vperm.xlu0 %562, %v559
        %v564 = vpop.permute.xlu0 %563
        %567 = vset.pattern.permute.xlu0 0
        %568 = vperm.xlu0 %567, %v560
        %v569 = vpop.permute.xlu0 %568
        %v571 = vmul.f32 %v564, %v518
        %v572 = vmul.f32 %v569, %v518
        %v573 = vadd.f32 %v557, %v571
        %v574 = vadd.f32 %v558, %v572
        %vm575 = vcmask 261120
        %v576 = vsel %vm575, %v545, 0.0
        %577 = vadd.xlane.f32.xlu0 %v576
        %v578 = vpop.xlane.xlu0 %577
        %v579 = vsel %vm575, %v546, 0.0
        %580 = vadd.xlane.f32.xlu0 %v579
        %v581 = vpop.xlane.xlu0 %580
        %vm582 = vcmask 523264
        %v583 = vsel %vm582, %v573, 0.0
        %584 = vadd.xlane.f32.xlu0 %v583
        %v585 = vpop.xlane.xlu0 %584
        %v586 = vsel %vm582, %v574, 0.0
        %587 = vadd.xlane.f32.xlu0 %v586
        %v588 = vpop.xlane.xlu0 %587
        %v589 = vadd.f32 %v578, %v585
        %v590 = vadd.f32 %v581, %v588
        %v591 = vmul.f32 %v545, %v545
        %v592 = vmul.f32 %v546, %v546
        %v593 = vsel %vm575, %v591, 0.0
        %594 = vadd.xlane.f32.xlu0 %v593
        %v595 = vpop.xlane.xlu0 %594
        %v596 = vsel %vm575, %v592, 0.0
        %597 = vadd.xlane.f32.xlu0 %v596
        %v598 = vpop.xlane.xlu0 %597
        %v599 = vmul.f32 %v573, %v573
        %v600 = vmul.f32 %v574, %v574
        %v601 = vsel %vm582, %v599, 0.0
        %602 = vadd.xlane.f32.xlu0 %v601
        %v603 = vpop.xlane.xlu0 %602
        %v604 = vsel %vm582, %v600, 0.0
        %605 = vadd.xlane.f32.xlu0 %v604
        %v606 = vpop.xlane.xlu0 %605
        %v607 = vadd.f32 %v595, %v603
        %v608 = vadd.f32 %v598, %v606
        %v609 = vmul.f32 %v589, 0.010416667
        %v610 = vmul.f32 %v590, 0.010416667
        %v611 = vmul.f32 %v607, 0.010416667
        %v612 = vmul.f32 %v608, 0.010416667
        %v613 = vmul.f32 %v609, %v609
        %v614 = vmul.f32 %v610, %v610
        %v615 = vsub.f32 %v611, %v613
        %v616 = vsub.f32 %v612, %v614
        %v617 = vmax.f32 %v615, 0.0
        %v618 = vmax.f32 %v616, 0.0
        %v619 = vadd.f32 %v617, 1e-05
        %v620 = vadd.f32 %v618, 1e-05
        %v621 = vrsqrt.pop %v619
        %v622 = vmul.f32 %v621, %v619
        %v623 = vmul.f32 %v622, %v621
        %v624 = vmul.f32 0.5, %v623
        %v625 = vsub.f32 1.5, %v624
        %v626 = vmul.f32 %v621, %v625
        %vm627 = vweird.f32 %v619
        %vm628 = vweird.f32 %v621
        %vm629 = vmor %vm627, %vm628
        %v630 = vsel %vm629, %v621, %v626
        %v631 = vrsqrt.pop %v620
        %v632 = vmul.f32 %v631, %v620
        %v633 = vmul.f32 %v632, %v631
        %v634 = vmul.f32 0.5, %v633
        %v635 = vsub.f32 1.5, %v634
        %v636 = vmul.f32 %v631, %v635
        %vm637 = vweird.f32 %v620
        %vm638 = vweird.f32 %v631
        %vm639 = vmor %vm637, %vm638
        %v640 = vsel %vm639, %v631, %v636
        %v641 = vsub.f32 %v545, %v609
        %v642 = vsub.f32 %v546, %v610
        %v643 = vmul.f32 %v641, %v630
        %v644 = vmul.f32 %v642, %v640
        %v645 = vsub.f32 %v573, %v609
        %v646 = vsub.f32 %v574, %v610
        %v647 = vmul.f32 %v645, %v630
        %v648 = vmul.f32 %v646, %v640
        %v649 = vld [vmem:[%s6] sm:$0xff]
        %v650 = vld [vmem:[%s6 + $0x8] sm:$0xff]
        %v651 = vld [vmem:[%s6 + $0x10] sm:$0xff]
        %v652 = vld [vmem:[%s6 + $0x18] sm:$0xff]
        %v653 = vld [vmem:[%s7] sm:$0xff]
        %v654 = vld [vmem:[%s7 + $0x8] sm:$0xff]
        %v655 = vld [vmem:[%s7 + $0x10] sm:$0xff]
        %v656 = vld [vmem:[%s7 + $0x18] sm:$0xff]
        %v657 = vld [vmem:[%s7 + $0x20] sm:$0xff]
        %v658 = vld [vmem:[%s7 + $0x28] sm:$0xff]
        %v659 = vld [vmem:[%s7 + $0x30] sm:$0xff]
        %v660 = vld [vmem:[%s7 + $0x38] sm:$0xff]
        %v662 = vsel %vm582, %v647, 0
        %v665 = vsel %vm582, %v648, 0
        %667 = vmatpush.msra.mxu0 0.0
        %668 = vmatpush.msra.mxu0 0.0
        %669 = vmatpush.msra.mxu0 0.0
        %670 = vmatpush.msra.mxu0 0.0
        %671 = vmatpush.msra.mxu0 0.0
        %672 = vmatpush.msra.mxu0 0.0
        %673 = vmatpush.msra.mxu0 0.0
        %674 = vmatpush.msra.mxu0 0.0
        %675 = vmatpush.msra.mxu0 %v660
        %676 = vmatpush.msra.mxu0 %v659
        %677 = vmatpush.msra.mxu0 %v658
        %678 = vmatpush.msra.mxu0 %v657
        %679 = vmatpush.msra.mxu0 %v656
        %680 = vmatpush.msra.mxu0 %v655
        %681 = vmatpush.msra.mxu0 %v654
        %682 = vmatpush.msra.mxu0 %v653
        %683 = vmatmul.f32.gmra.mxu0 %v662
        %v684 = vpop.f32.mrf.mxu0
        %v685 = vadd.f32 0.0, %v684
        %686 = vmatmul.f32.gmra.mxu0 %v665
        %v687 = vpop.f32.mrf.mxu0
        %v688 = vadd.f32 0.0, %v687
        %689 = vdwg.mxu0
        %v691 = vsel %vm575, %v643, 0
        %v694 = vsel %vm575, %v644, 0
        %696 = vmatpush.msra.mxu0 0.0
        %697 = vmatpush.msra.mxu0 0.0
        %698 = vmatpush.msra.mxu0 0.0
        %699 = vmatpush.msra.mxu0 0.0
        %700 = vmatpush.msra.mxu0 0.0
        %701 = vmatpush.msra.mxu0 0.0
        %702 = vmatpush.msra.mxu0 0.0
        %703 = vmatpush.msra.mxu0 0.0
        %704 = vmatpush.msra.mxu0 0.0
        %705 = vmatpush.msra.mxu0 0.0
        %706 = vmatpush.msra.mxu0 0.0
        %707 = vmatpush.msra.mxu0 0.0
        %708 = vmatpush.msra.mxu0 %v652
        %709 = vmatpush.msra.mxu0 %v651
        %710 = vmatpush.msra.mxu0 %v650
        %711 = vmatpush.msra.mxu0 %v649
        %712 = vmatmul.f32.gmra.mxu0 %v691
        %v713 = vpop.f32.mrf.mxu0
        %v714 = vadd.f32 %v685, %v713
        %715 = vmatmul.f32.gmra.mxu0 %v694
        %v716 = vpop.f32.mrf.mxu0
        %v717 = vadd.f32 %v688, %v716
        %718 = vdwg.mxu0
        %v719 = vld [vmem:[%s8] sm:$0x1]
        %v721 = vperm.slane %v719, 0
        %v723 = vadd.f32 %v714, %v721
        %v724 = vadd.f32 %v717, %v721
        %v725 = vmul.f32 %v723, 0.5
        %v726 = vmul.f32 %v724, 0.5
        %v727 = vmul.f32 %v723, 0.70710677
        %v728 = vmul.f32 %v724, 0.70710677
        %v729 = vmul.f32 %v727, %v727
        %v730 = vmin.f32 16.0, %v729
        %v731 = vmul.f32 %v730, 2.1237322e-06
        %v732 = vadd.f32 %v731, 0.00028619796
        %v733 = vmul.f32 %v730, %v732
        %v734 = vadd.f32 %v733, 0.0036580483
        %v735 = vmul.f32 %v730, %v734
        %v736 = vadd.f32 %v735, 0.05243302
        %v737 = vmul.f32 %v730, %v736
        %v738 = vadd.f32 %v737, 0.18741608
        %v739 = vmul.f32 %v730, %v738
        %v740 = vadd.f32 %v739, 1.1283791
        %v741 = vmul.f32 %v727, %v740
        %v742 = vmul.f32 %v730, 3.8918573e-05
        %v743 = vadd.f32 %v742, 0.001143296
        %v744 = vmul.f32 %v730, %v743
        %v745 = vadd.f32 %v744, 0.014752088
        %v746 = vmul.f32 %v730, %v745
        %v747 = vadd.f32 %v746, 0.112945676
        %v748 = vmul.f32 %v730, %v747
        %v749 = vadd.f32 %v748, 0.4994258
        %v750 = vmul.f32 %v730, %v749
        %v751 = vadd.f32 %v750, 1.0
        %v752 = vrcp.pop %v751
        %v753 = vmul.f32 %v751, %v752
        %v754 = vsub.f32 1.0, %v753
        %v755 = vmul.f32 %v752, %v754
        %v756 = vadd.f32 %v752, %v755
        %vm757 = vweird.f32 %v751
        %vm758 = vweird.f32 %v752
        %vm759 = vmor %vm757, %vm758
        %v760 = vsel %vm759, %v752, %v756
        %v761 = vand.u32 2147483647, %v751
        %vm762 = vcmp.eq.f32.partialorder %v761, 8.507059e+37
        %v763 = vand.u32 %v751, 2147483648
        %v764 = vor.u32 1.1754944e-38, %v763
        %v765 = vsel %vm762, %v764, %v760
        %v766 = vmul.f32 %v741, %v765
        %v767 = vmin.f32 %v766, 1.0
        %v768 = vmax.f32 %v767, -1.0
        %v769 = vmul.f32 %v728, %v728
        %v770 = vmin.f32 16.0, %v769
        %v771 = vmul.f32 %v770, 2.1237322e-06
        %v772 = vadd.f32 %v771, 0.00028619796
        %v773 = vmul.f32 %v770, %v772
        %v774 = vadd.f32 %v773, 0.0036580483
        %v775 = vmul.f32 %v770, %v774
        %v776 = vadd.f32 %v775, 0.05243302
        %v777 = vmul.f32 %v770, %v776
        %v778 = vadd.f32 %v777, 0.18741608
        %v779 = vmul.f32 %v770, %v778
        %v780 = vadd.f32 %v779, 1.1283791
        %v781 = vmul.f32 %v728, %v780
        %v782 = vmul.f32 %v770, 3.8918573e-05
        %v783 = vadd.f32 %v782, 0.001143296
        %v784 = vmul.f32 %v770, %v783
        %v785 = vadd.f32 %v784, 0.014752088
        %v786 = vmul.f32 %v770, %v785
        %v787 = vadd.f32 %v786, 0.112945676
        %v788 = vmul.f32 %v770, %v787
        %v789 = vadd.f32 %v788, 0.4994258
        %v790 = vmul.f32 %v770, %v789
        %v791 = vadd.f32 %v790, 1.0
        %v792 = vrcp.pop %v791
        %v793 = vmul.f32 %v791, %v792
        %v794 = vsub.f32 1.0, %v793
        %v795 = vmul.f32 %v792, %v794
        %v796 = vadd.f32 %v792, %v795
        %vm797 = vweird.f32 %v791
        %vm798 = vweird.f32 %v792
        %vm799 = vmor %vm797, %vm798
        %v800 = vsel %vm799, %v792, %v796
        %v801 = vand.u32 2147483647, %v791
        %vm802 = vcmp.eq.f32.partialorder %v801, 8.507059e+37
        %v803 = vand.u32 %v791, 2147483648
        %v804 = vor.u32 1.1754944e-38, %v803
        %v805 = vsel %vm802, %v804, %v800
        %v806 = vmul.f32 %v781, %v805
        %v807 = vmin.f32 %v806, 1.0
        %v808 = vmax.f32 %v807, -1.0
        %v809 = vadd.f32 %v768, 1.0
        %v810 = vadd.f32 %v808, 1.0
        %v811 = vmul.f32 %v725, %v809
        %v812 = vmul.f32 %v726, %v810
        %v813 = vld [vmem:[%s9] sm:$0xff]
        %v814 = vld [vmem:[%s9 + $0x8] sm:$0xff]
        %v815 = vld [vmem:[%s9 + $0x10] sm:$0xff]
        %v816 = vld [vmem:[%s9 + $0x18] sm:$0xff]
        %v817 = vld [vmem:[%s9 + $0x20] sm:$0xff]
        %v818 = vld [vmem:[%s9 + $0x28] sm:$0xff]
        %v819 = vld [vmem:[%s9 + $0x30] sm:$0xff]
        %v820 = vld [vmem:[%s9 + $0x38] sm:$0xff]
        %v821 = vld [vmem:[%s10] sm:$0x1]
        %v823 = vperm.slane %v821, 0
        %v826 = vsel %vm582, %v811, 0
        %v829 = vsel %vm582, %v812, 0
        %831 = vmatpush.msra.mxu0 0.0
        %832 = vmatpush.msra.mxu0 0.0
        %833 = vmatpush.msra.mxu0 0.0
        %834 = vmatpush.msra.mxu0 0.0
        %835 = vmatpush.msra.mxu0 0.0
        %836 = vmatpush.msra.mxu0 0.0
        %837 = vmatpush.msra.mxu0 0.0
        %838 = vmatpush.msra.mxu0 0.0
        %839 = vmatpush.msra.mxu0 %v820
        %840 = vmatpush.msra.mxu0 %v819
        %841 = vmatpush.msra.mxu0 %v818
        %842 = vmatpush.msra.mxu0 %v817
        %843 = vmatpush.msra.mxu0 %v816
        %844 = vmatpush.msra.mxu0 %v815
        %845 = vmatpush.msra.mxu0 %v814
        %846 = vmatpush.msra.mxu0 %v813
        %847 = vmatmul.f32.gmra.mxu0 %v826
        %v848 = vpop.f32.mrf.mxu0
        %v849 = vadd.f32 %v823, %v848
        %850 = vmatmul.f32.gmra.mxu0 %v829
        %v851 = vpop.f32.mrf.mxu0
        %v852 = vadd.f32 %v823, %v851
        %853 = vdwg.mxu0
        %854 = vst.msk [vmem:[%s482] sm:$0xff] %vm575, %v849
        %855 = vst.msk [vmem:[%s482 + $0x8] sm:$0xff] %vm575, %v852
        %s856 = sand.u32 %s288, 1
        %s857 = scalar_lea.sflag [#allocation4], %s856
        %s858 = sand.u32 %s288, 1
        %s859 = smul.addr %s858, 16
        %s860 = scalar_lea.vmem [#allocation8], %s859
        // Predicated region
        $region77: #{tpu_custom_call.1} parent=63 // pred_check
          %p861 = pneg %p298
        $region78: #{tpu_custom_call.1} parent=63 // pred_check_branch
          %863 = sbr.rel (%p861) target = $region80
        $region79: #{tpu_custom_call.1} parent=63 // pred_region
          %s864 = smul.u32 2, %s29
          %866 = vsyncadd %s857, 0
          %s867 = smul.addr %s864, 8
          %s868 = scalar_lea.hbm %s11, %s867
          %s869 = sshll.u32 %s860, 4
          %s870 = int_to_ptr.vmem [resolvable:$true] %s869
          %s871 = sshll.u32 %s868, 4
          %s872 = int_to_ptr.hbm [resolvable:$true] %s871
          %877 = dma.vmem_to_hbm [thread:$0]  %s870, 256, %s872, %s857, 128, 128, 8
        $region80: #{tpu_custom_call.1} parent=63 // pred_fallthru
          _
      $region64: #{tpu_custom_call.1} parent=5 // pred_fallthru
        _
      %p878 = scmp.le.s32.totalorder 2, %s24
      // Predicated region
      $region81: #{tpu_custom_call.1} parent=5 // pred_check
        %p879 = pneg %p878
      $region82: #{tpu_custom_call.1} parent=5 // pred_check_branch
        %881 = sbr.rel (%p879) target = $region84
      $region83: #{tpu_custom_call.1} parent=5 // pred_region
        %s882 = ssub.s32 %s24, 2
        // Predicated region
        $region85: #{tpu_custom_call.1} parent=83 // pred_check
          %p883 = pneg %p304
        $region86: #{tpu_custom_call.1} parent=83 // pred_check_branch
          %885 = sbr.rel (%p883) target = $region88
        $region87: #{tpu_custom_call.1} parent=83 // pred_region
          %s886 = sand.u32 %s289, 1
          %s887 = scalar_lea.sflag [#allocation4], %s886
          %s888 = sand.u32 %s289, 1
          %s889 = smul.addr %s888, 16
          %s890 = scalar_lea.vmem [#allocation8], %s889
          %892 = dma.done %s887, 256
        $region88: #{tpu_custom_call.1} parent=83 // pred_fallthru
          _
      $region84: #{tpu_custom_call.1} parent=5 // pred_fallthru
        _
    $region6: #{tpu_custom_call.1} parent=1 // loop_footer
      %s28 = sadd.s32 1, %s24
    $region7: #{tpu_custom_call.1} parent=1 // loop_footer_branch
      %23 = sbr.rel target = $region3
    $region8: #{tpu_custom_call.1} parent=1 // loop_exit
      _
    %893 = vsyncpa [#allocation3], 1
    %s894 = scalar_lea.sflag [#allocation3], 1
    %895 = vsyncpa %s894, 1
    %896 = vsyncpa [#allocation6], 1
    %897 = vsyncpa [#allocation4], 1
    %s898 = scalar_lea.sflag [#allocation4], 1
    %899 = vsyncpa %s898, 1

</llo_original>
